<compile_context>
chip_gen: v7x
topology: tpu7x:2x2x1
jax: 0.10.0
libtpu: 0.0.40
codegen_flags: <defaults>
</compile_context>

<pallas_src>
import functools

import jax
import jax.numpy as jnp
from jax import lax
from jax.experimental import pallas as pl
from jax.experimental.pallas import tpu as pltpu


def _round_up(v, m):
    return ((v + m - 1) // m) * m


def _final_layer_kernel(x_ref, w_ref, b_ref, o_ref, acc_ref, *, seq_len, tl):
    """One (n-block, l-block) grid step.

    x_ref:   (TN, C, TL)  native (N, C, L) tile, L on the lane axis (streamed)
    w_ref:   (C, O_pad)   pre-transposed weight (VMEM resident)
    b_ref:   (1, O_pad)   bias (f32)
    o_ref:   (TN, O_pad)  lane-dense output tile
    acc_ref: (TN, C) f32  running max over L (VMEM scratch, persists over l)
    """
    l = pl.program_id(1)
    n_l = pl.num_programs(1)

    @pl.when(l == 0)
    def _():
        acc_ref[...] = jnp.full(acc_ref.shape, -jnp.inf, dtype=acc_ref.dtype)

    def _update(mask_tail):
        xb = x_ref[...]
        if mask_tail:
            col = l * tl + lax.broadcasted_iota(jnp.int32, xb.shape, 2)
            xb = jnp.where(col < seq_len, xb, jnp.asarray(-jnp.inf, xb.dtype))
        acc_ref[...] = jnp.maximum(
            acc_ref[...], jnp.max(xb, axis=2).astype(acc_ref.dtype))

    if seq_len % tl != 0:
        # Only the last L tile can contain OOB-padded lanes; pay the iota/compare/select
        # there only and keep the streamed tiles a pure VPU/XLU max.
        @pl.when(l != n_l - 1)
        def _():
            _update(mask_tail=False)

        @pl.when(l == n_l - 1)
        def _():
            _update(mask_tail=True)
    else:
        _update(mask_tail=False)

    @pl.when(l == n_l - 1)
    def _():
        # Epilogue matmul fed in the weight's dtype (bf16 on bf16 models -> native MXU
        # input on v6e/v7x), accumulated in f32.  Rows past N (when tn does not divide
        # N) hold garbage from OOB-padded reads, but their output rows are bounds-masked
        # by Pallas on store, so they never reach HBM.
        y = jnp.dot(acc_ref[...].astype(w_ref.dtype), w_ref[...],
                    preferred_element_type=jnp.float32)
        o_ref[...] = (y + b_ref[...]).astype(o_ref.dtype)


def prepare_final_layer_params(weight, bias=None, *, mm_dtype=None):
    """One-time param prep: transpose to (C, O) and zero-pad O up to a multiple of 128
    so the kernel's output store is lane-dense.  Hoist this to parameter-init time."""
    O, C = weight.shape
    O_pad = _round_up(O, 128)
    if mm_dtype is None:
        mm_dtype = weight.dtype
    w_t = jnp.zeros((C, O_pad), mm_dtype).at[:, :O].set(weight.astype(mm_dtype).T)
    b_p = jnp.zeros((1, O_pad), jnp.float32)
    if bias is not None:
        b_p = b_p.at[0, :O].set(bias.astype(jnp.float32))
    return w_t, b_p


def _choose_tiles(N, C, L, O_pad, x_itemsize, mm_itemsize, vmem_budget):
    """C-aware, VMEM-budget-driven tile selection."""
    # Parallel N axis: >= 2 blocks whenever possible so both v7x TensorCores get work.
    if N <= 8:
        tn = N
    else:
        tn = min(256, _round_up(-(-N // 2), 8))

    min_tl = max(128, 2048 // x_itemsize)       # >= 2 KiB per strided DMA run
    max_tl = max(min_tl, 4096 // x_itemsize)    # HBM roofline knee ~512-1024 f32

    def fixed_bytes(tn_):
        return (C * O_pad * mm_itemsize         # resident weight
                + O_pad * 4                     # resident bias (f32)
                + 2 * tn_ * O_pad * x_itemsize  # double-buffered output tile
                + tn_ * max(C, 128) * 4)        # f32 running-max scratch

    while True:
        x_buf_budget = max(0, vmem_budget - fixed_bytes(tn)) // 2   # 2 x-buffers
        tl = (x_buf_budget // max(1, tn * C * x_itemsize)) // 128 * 128
        tl = min(tl, max_tl)
        if tl >= min_tl or tn <= 8:
            break
        tn = max(8, _round_up(tn // 2, 8))      # shrink N tile before L tile
    tl = max(tl, 128)
    if tl >= L:
        tl = L                                  # cover the full reduction axis
    return tn, tl


def final_layer(x, weight, bias=None, *, tn=None, tl=None, params=None):
    """x: (N, C, L); weight: (O, C); bias: (O,) or None.
    Returns (N, O, 1) = Linear(max(x, axis=2)).unsqueeze(-1)."""
    N, C, L = x.shape
    O, C_w = weight.shape
    assert C_w == C, "weight must be (out_features, in_features) with in_features == C"
    assert jnp.issubdtype(x.dtype, jnp.floating), "float-only (-inf is the max identity)"

    # bf16 MXU feed for bf16 models; keep f32 weights for f32 inputs (matches reference).
    mm_dtype = jnp.bfloat16 if x.dtype == jnp.bfloat16 else weight.dtype
    if params is None:
        # TODO(synk): in a real model, call prepare_final_layer_params once at init time
        # and pass the result via `params=` so these XLA ops leave the hot path.
        params = prepare_final_layer_params(weight, bias, mm_dtype=mm_dtype)
    w_t, b_p = params
    O_pad = w_t.shape[1]

    x_itemsize = jnp.dtype(x.dtype).itemsize
    mm_itemsize = jnp.dtype(w_t.dtype).itemsize

    # VMEM budget clamped to the actual device (v7x: 64 MiB/TC vs 128 MiB on v5e/v6e).
    try:
        vmem_cap = int(pltpu.get_tpu_info().vmem_capacity_bytes)
    except Exception:
        vmem_cap = 64 * 1024 * 1024             # conservative (v7x per-TensorCore)
    vmem_budget = (vmem_cap * 3) // 4

    tn_auto, tl_auto = _choose_tiles(N, C, L, O_pad, x_itemsize, mm_itemsize, vmem_budget)
    tn = tn_auto if tn is None else tn
    tl = tl_auto if tl is None else tl

    grid = (pl.cdiv(N, tn), pl.cdiv(L, tl))

    # Requested scoped-VMEM limit: enough for the tiles (with headroom) but never above
    # the device-derived budget (v5e's default scoped limit is only 16 MiB).
    vmem_need = (2 * tn * C * max(tl, 128) * x_itemsize
                 + C * O_pad * mm_itemsize
                 + O_pad * 4
                 + 2 * tn * O_pad * x_itemsize
                 + tn * max(C, 128) * 4)
    vmem_limit = int(min(vmem_budget, max(2 * vmem_need, 16 * 1024 * 1024)))

    # Single-buffer the resident weight/bias (their block index never changes) once the
    # VMEM saving is worth it; for small params keep the default pipelining.
    if C * O_pad * mm_itemsize >= (1 << 20):
        w_spec = pl.BlockSpec((C, O_pad), lambda i, l: (0, 0),
                              pipeline_mode=pl.Buffered(1))
        b_spec = pl.BlockSpec((1, O_pad), lambda i, l: (0, 0),
                              pipeline_mode=pl.Buffered(1))
    else:
        w_spec = pl.BlockSpec((C, O_pad), lambda i, l: (0, 0))
        b_spec = pl.BlockSpec((1, O_pad), lambda i, l: (0, 0))

    cost = pl.CostEstimate(
        flops=int(2 * N * C * O_pad + N * C * L),
        transcendentals=0,
        bytes_accessed=int(N * C * L * x_itemsize + C * O_pad * mm_itemsize
                           + O_pad * 4 + N * O_pad * x_itemsize),
    )

    kernel = functools.partial(_final_layer_kernel, seq_len=L, tl=tl)

    out = pl.pallas_call(
        kernel,
        out_shape=jax.ShapeDtypeStruct((N, O_pad), x.dtype),
        grid_spec=pltpu.PrefetchScalarGridSpec(
            num_scalar_prefetch=0,
            grid=grid,
            in_specs=[
                pl.BlockSpec((tn, C, tl), lambda i, l: (i, 0, l)),  # x, native layout
                w_spec,                                             # resident weight
                b_spec,                                             # resident bias
            ],
            out_specs=pl.BlockSpec((tn, O_pad), lambda i, l: (i, 0)),
            scratch_shapes=[pltpu.VMEM((tn, C), jnp.float32)],
        ),
        compiler_params=pltpu.CompilerParams(
            dimension_semantics=("parallel", "arbitrary"),
            vmem_limit_bytes=vmem_limit,
        ),
        cost_estimate=cost,
    )(x, w_t, b_p)

    # Strip O padding and apply the trailing unsqueeze(-1) (pure glue).
    return out[:, :O][:, :, None]


def reference(x, weight, bias):
    x_max = jnp.max(x, axis=2)
    y = x_max @ weight.T + bias
    return y[:, :, None]


if __name__ == "__main__":
    key = jax.random.PRNGKey(0)
    k_x, k_w, k_b = jax.random.split(key, 3)

    N, input_size, L = 2, 32, 8
    output_size = 16

    x = jax.random.normal(k_x, (N, input_size, L), dtype=jnp.float32)
    # Deterministic nn.Linear-style init (uniform in +/- 1/sqrt(fan_in)).
    bound = 1.0 / jnp.sqrt(jnp.float32(input_size))
    weight = jax.random.uniform(
        k_w, (output_size, input_size), jnp.float32, -bound, bound
    )
    bias = jax.random.uniform(k_b, (output_size,), jnp.float32, -bound, bound)

    out = final_layer(x, weight, bias)
    jax.block_until_ready(out)

    ref = reference(x, weight, bias)
    assert out.shape == (N, output_size, 1)
    assert jnp.allclose(out, ref, atol=1e-5, rtol=1e-5)
    print("KERNEL_OK")
</pallas_src>

<mosaic_0001>
module attributes {stable_mosaic.version = 11 : i64} {
  func.func @_final_layer_kernel(%arg0: i32, %arg1: i32, %arg2: memref<2x32x8xf32, #tpu.memory_space<vmem>>, %arg3: memref<32x128xf32, #tpu.memory_space<vmem>>, %arg4: memref<1x128xf32, #tpu.memory_space<vmem>>, %arg5: memref<2x128xf32, #tpu.memory_space<vmem>>, %arg6: memref<2x32xf32, #tpu.memory_space<vmem>>) attributes {dimension_semantics = [#tpu.dimension_semantics<parallel>, #tpu.dimension_semantics<arbitrary>], iteration_bounds = array<i64: 1, 1>, scalar_prefetch = 0 : i64, scratch_operands = 1 : i64, tpu.core_type = #tpu.core_type<tc>, window_params = [{transform_indices = @transform_0, window_bounds = array<i64: 2, 32, 8>}, {pipeline_mode = #tpu.pipeline_mode<synchronous>, transform_indices = @transform_1, window_bounds = array<i64: 32, 128>}, {pipeline_mode = #tpu.pipeline_mode<synchronous>, transform_indices = @transform_2, window_bounds = array<i64: 1, 128>}, {transform_indices = @transform_3, window_bounds = array<i64: 2, 128>}]} {
    %c0_i32 = arith.constant 0 : i32
    %0 = arith.cmpi eq, %arg1, %c0_i32 : i32
    %1 = arith.extui %0 : i1 to i32
    %c0_i32_0 = arith.constant 0 : i32
    %2 = arith.cmpi ne, %1, %c0_i32_0 : i32
    scf.if %2 {
      %cst_9 = arith.constant 0xFF800000 : f32
      %11 = vector.broadcast %cst_9 : f32 to vector<2x32xf32>
      %c0_10 = arith.constant 0 : index
      %c0_11 = arith.constant 0 : index
      %12 = vector.load %arg6[%c0_10, %c0_11] : memref<2x32xf32, #tpu.memory_space<vmem>>, vector<2x32xf32>
      tpu.vector_store %arg6[%c0_10, %c0_11], %11 {strides = array<i32>} : memref<2x32xf32, #tpu.memory_space<vmem>>, vector<2x32xf32>,
    } else {
    }
    %c0 = arith.constant 0 : index
    %c0_1 = arith.constant 0 : index
    %c0_2 = arith.constant 0 : index
    %3 = vector.load %arg2[%c0, %c0_1, %c0_2] : memref<2x32x8xf32, #tpu.memory_space<vmem>>, vector<2x32x8xf32>
    %c0_3 = arith.constant 0 : index
    %c0_4 = arith.constant 0 : index
    %4 = vector.load %arg6[%c0_3, %c0_4] : memref<2x32xf32, #tpu.memory_space<vmem>>, vector<2x32xf32>
    %cst = arith.constant dense<0xFF800000> : vector<2x32xf32>
    %5 = vector.multi_reduction <maximumf>, %3, %cst [2] : vector<2x32x8xf32> to vector<2x32xf32>
    %6 = arith.maximumf %4, %5 : vector<2x32xf32>
    %c0_5 = arith.constant 0 : index
    %c0_6 = arith.constant 0 : index
    %7 = vector.load %arg6[%c0_5, %c0_6] : memref<2x32xf32, #tpu.memory_space<vmem>>, vector<2x32xf32>
    tpu.vector_store %arg6[%c0_5, %c0_6], %6 {strides = array<i32>} : memref<2x32xf32, #tpu.memory_space<vmem>>, vector<2x32xf32>,
    %c0_i32_7 = arith.constant 0 : i32
    %8 = arith.cmpi eq, %arg1, %c0_i32_7 : i32
    %9 = arith.extui %8 : i1 to i32
    %c0_i32_8 = arith.constant 0 : i32
    %10 = arith.cmpi ne, %9, %c0_i32_8 : i32
    scf.if %10 {
      %c0_9 = arith.constant 0 : index
      %c0_10 = arith.constant 0 : index
      %11 = vector.load %arg6[%c0_9, %c0_10] : memref<2x32xf32, #tpu.memory_space<vmem>>, vector<2x32xf32>
      %c0_11 = arith.constant 0 : index
      %c0_12 = arith.constant 0 : index
      %12 = vector.load %arg3[%c0_11, %c0_12] : memref<32x128xf32, #tpu.memory_space<vmem>>, vector<32x128xf32>
      %cst_13 = arith.constant dense<0.000000e+00> : vector<2x128xf32>
      %13 = tpu.matmul %11, %12, %cst_13 {dimension_numbers = #tpu.dot_dimension_numbers<[1], [0], [0], [1], [0, 0, 1, 1], [], []>} : vector<2x32xf32>, vector<32x128xf32>, vector<2x128xf32> -> vector<2x128xf32>
      %c0_14 = arith.constant 0 : index
      %c0_15 = arith.constant 0 : index
      %14 = vector.load %arg4[%c0_14, %c0_15] : memref<1x128xf32, #tpu.memory_space<vmem>>, vector<1x128xf32>
      %15 = vector.broadcast %14 : vector<1x128xf32> to vector<2x128xf32>
      %16 = arith.addf %13, %15 : vector<2x128xf32>
      %c0_16 = arith.constant 0 : index
      %c0_17 = arith.constant 0 : index
      %17 = vector.load %arg5[%c0_16, %c0_17] : memref<2x128xf32, #tpu.memory_space<vmem>>, vector<2x128xf32>
      tpu.vector_store %arg5[%c0_16, %c0_17], %16 {strides = array<i32>} : memref<2x128xf32, #tpu.memory_space<vmem>>, vector<2x128xf32>,
    } else {
    }
    return
  }
  func.func @transform_0(%arg0: i32, %arg1: i32) -> (i32, i32, i32) {
    %c0_i32 = arith.constant 0 : i32
    %c0_i32_0 = arith.constant 0 : i32
    return %arg0, %c0_i32, %arg1 : i32, i32, i32
  }
  func.func @transform_1(%arg0: i32, %arg1: i32) -> (i32, i32) {
    %c0_i32 = arith.constant 0 : i32
    %c0_i32_0 = arith.constant 0 : i32
    %c0_i32_1 = arith.constant 0 : i32
    return %c0_i32, %c0_i32_0 : i32, i32
  }
  func.func @transform_2(%arg0: i32, %arg1: i32) -> (i32, i32) {
    %c0_i32 = arith.constant 0 : i32
    %c0_i32_0 = arith.constant 0 : i32
    %c0_i32_1 = arith.constant 0 : i32
    return %c0_i32, %c0_i32_0 : i32, i32
  }
  func.func @transform_3(%arg0: i32, %arg1: i32) -> (i32, i32) {
    %c0_i32 = arith.constant 0 : i32
    %c0_i32_0 = arith.constant 0 : i32
    return %arg0, %c0_i32 : i32, i32
  }
}

</mosaic_0001>

<llo_original>
// kernel: tpu_custom_call.1
$region0: #{tpu_custom_call.1}
  #allocation0 [shape = 'u32[]', space=smem, size = 0x4, offset = 0x4, fixed_abs, tag = 'smem constant byte address 0x4 - core index']
  #allocation1 [shape = 'u32[144,128]{1,0:T(1,128)}', space=vmem, size = 0x12000, scoped, tag = 'internal scratch']
  #allocation2 [shape = 'f32[2,32]{1,0:T(2,128)}', space=vmem, size = 0x400, scoped, tag = 'scratch operand']
  %s0 = inlined_call_operand.vmem [shape: f32[2,32,8], index: 0, kind: input, shape index: {}]
  %s1 = inlined_call_operand.vmem [shape: f32[32,128], index: 1, kind: input, shape index: {}]
  %s2 = inlined_call_operand.vmem [shape: f32[1,128], index: 2, kind: input, shape index: {}]
  %s3 = inlined_call_operand.hbm [shape: f32[2,128], index: 3, kind: output, shape index: {}]
  %s4 = sld [smem:[#allocation0]]
  $region30: #{tpu_custom_call.1} parent=0
    _
  %s6 = ssub.s32 1, %s4
  %s7 = scalar_select 0, %s6, %s4
  $region1: #{tpu_custom_call.1} parent=0
    #allocation3 [shape = 'u8[1024]{0}', space=vmem, size = 0x400, scoped, tag = 'output window, operand 0, single buffered']
    #allocation4 [shape = 's32[1]{0}', space=sflag, size = 0x4, scoped, tag = 'scoped memory for tpu_custom_call.1']
    %8 = vsyncpa [#allocation4], 0
    // Predicated region
    $region2: #{tpu_custom_call.1} parent=1 // pred_check
      _
    $region3: #{tpu_custom_call.1} parent=1 // pred_check_branch
      %10 = sbr.rel (0) target = $region5
    $region4: #{tpu_custom_call.1} parent=1 // pred_region
      _
    $region5: #{tpu_custom_call.1} parent=1 // pred_fallthru
      _
    // Predicated region
    $region6: #{tpu_custom_call.1} parent=1 // pred_check
      _
    $region7: #{tpu_custom_call.1} parent=1 // pred_check_branch
      %12 = sbr.rel (0) target = $region9
    $region8: #{tpu_custom_call.1} parent=1 // pred_region
      _
    $region9: #{tpu_custom_call.1} parent=1 // pred_fallthru
      _
    // Predicated region
    $region10: #{tpu_custom_call.1} parent=1 // pred_check
      _
    $region11: #{tpu_custom_call.1} parent=1 // pred_check_branch
      %14 = sbr.rel (0) target = $region13
    $region12: #{tpu_custom_call.1} parent=1 // pred_region
      _
    $region13: #{tpu_custom_call.1} parent=1 // pred_fallthru
      _
    %p15 = scmp.eq.s32.totalorder 0, 0
    // Predicated region
    $region14: #{tpu_custom_call.1} parent=1 // pred_check
      %p16 = pneg %p15
    $region15: #{tpu_custom_call.1} parent=1 // pred_check_branch
      %18 = sbr.rel (%p16) target = $region17
    $region16: #{tpu_custom_call.1} parent=1 // pred_region
      %vm19 = vcmask 254976
      %20 = vst.msk [vmem:[#allocation2] sm:$0x3] %vm19, -inf
    $region17: #{tpu_custom_call.1} parent=1 // pred_fallthru
      _
    %v21 = vld [vmem:[%s0] sm:$0xff]
    %v22 = vld [vmem:[%s0 + $0x8] sm:$0xff]
    %v23 = vld [vmem:[%s0 + $0x10] sm:$0xff]
    %v24 = vld [vmem:[%s0 + $0x18] sm:$0xff]
    %v25 = vld [vmem:[%s0 + $0x20] sm:$0xff]
    %v26 = vld [vmem:[%s0 + $0x28] sm:$0xff]
    %v27 = vld [vmem:[%s0 + $0x30] sm:$0xff]
    %v28 = vld [vmem:[%s0 + $0x38] sm:$0xff]
    %v29 = vld [vmem:[#allocation2] sm:$0x3]
    %vm30 = vcmask 64512
    %v31 = vsel %vm30, %v21, -inf
    %32 = vmax.xlane.f32.xlu0 %v31
    %v33 = vpop.xlane.xlu0 %32
    %v34 = vsel %vm30, %v22, -inf
    %35 = vmax.xlane.f32.xlu0 %v34
    %v36 = vpop.xlane.xlu0 %35
    %v37 = vsel %vm30, %v23, -inf
    %38 = vmax.xlane.f32.xlu0 %v37
    %v39 = vpop.xlane.xlu0 %38
    %v40 = vsel %vm30, %v24, -inf
    %41 = vmax.xlane.f32.xlu0 %v40
    %v42 = vpop.xlane.xlu0 %41
    %v43 = vsel %vm30, %v25, -inf
    %44 = vmax.xlane.f32.xlu0 %v43
    %v45 = vpop.xlane.xlu0 %44
    %v46 = vsel %vm30, %v26, -inf
    %47 = vmax.xlane.f32.xlu0 %v46
    %v48 = vpop.xlane.xlu0 %47
    %v49 = vsel %vm30, %v27, -inf
    %50 = vmax.xlane.f32.xlu0 %v49
    %v51 = vpop.xlane.xlu0 %50
    %v52 = vsel %vm30, %v28, -inf
    %53 = vmax.xlane.f32.xlu0 %v52
    %v54 = vpop.xlane.xlu0 %53
    %v63 = vlaneseq
    %v64 = vand.u32 %v63, 127
    %v65 = vlaneseq
    %v66 = vshrl.u32 %v65, 7
    %v67 = vsub.s32 %v64, %v66
    %v68 = vrot.slane %v33, %v67
    %v69 = vadd.s32 %v64, 4294967288
    %v70 = vlaneseq
    %v71 = vshrl.u32 %v70, 7
    %v72 = vsub.s32 %v69, %v71
    %v73 = vrot.slane %v36, %v72
    %vm74 = vcmask 130112
    %v75 = vsel %vm74, %v73, %v68
    %v76 = vadd.s32 %v64, 4294967280
    %v77 = vlaneseq
    %v78 = vshrl.u32 %v77, 7
    %v79 = vsub.s32 %v76, %v78
    %v80 = vrot.slane %v39, %v79
    %vm81 = vcmask 195712
    %v82 = vsel %vm81, %v80, %v75
    %v83 = vadd.s32 %v64, 4294967272
    %v84 = vlaneseq
    %v85 = vshrl.u32 %v84, 7
    %v86 = vsub.s32 %v83, %v85
    %v87 = vrot.slane %v42, %v86
    %vm88 = vcmask 261312
    %v89 = vsel %vm88, %v87, %v82
    %v90 = vlaneseq
    %v91 = vshrl.u32 %v90, 7
    %v92 = vsub.s32 %v64, %v91
    %v93 = vrot.slane %v45, %v92
    %v94 = vlaneseq
    %v95 = vshrl.u32 %v94, 7
    %v96 = vsub.s32 %v69, %v95
    %v97 = vrot.slane %v48, %v96
    %v98 = vsel %vm74, %v97, %v93
    %v99 = vlaneseq
    %v100 = vshrl.u32 %v99, 7
    %v101 = vsub.s32 %v76, %v100
    %v102 = vrot.slane %v51, %v101
    %v103 = vsel %vm81, %v102, %v98
    %v104 = vlaneseq
    %v105 = vshrl.u32 %v104, 7
    %v106 = vsub.s32 %v83, %v105
    %v107 = vrot.slane %v54, %v106
    %v108 = vsel %vm88, %v107, %v103
    %vm109 = vcmask 1041409
    %v110 = vsel %vm109, %v108, %v89
    %v112 = vmax.f32 %v29, %v110
    %vm113 = vcmask 254976
    %114 = vst.msk [vmem:[#allocation2] sm:$0x3] %vm113, %v112
    // Predicated region
    $region18: #{tpu_custom_call.1} parent=1 // pred_check
      %p115 = pneg %p15
    $region19: #{tpu_custom_call.1} parent=1 // pred_check_branch
      %117 = sbr.rel (%p115) target = $region21
    $region20: #{tpu_custom_call.1} parent=1 // pred_region
      %v118 = vld [vmem:[#allocation2] sm:$0x3]
      %v119 = vld [vmem:[%s1] sm:$0xff]
      %v120 = vld [vmem:[%s1 + $0x8] sm:$0xff]
      %v121 = vld [vmem:[%s1 + $0x10] sm:$0xff]
      %v122 = vld [vmem:[%s1 + $0x18] sm:$0xff]
      %v123 = vld [vmem:[%s2] sm:$0x1]
      %v125 = vlaneseq
      %v126 = vshrl.u32 %v125, 7
      %v127 = vsub.s32 0, %v126
      %v128 = vrot.slane %v123, %v127
      %vm130 = vcmask 261120
      %v132 = vsel %vm130, %v118, 0
      %134 = vmatprep.subr.mxu0 0.0
      %135 = vmatpush1.msra.mxu0 %v119
      %136 = vmatprep.subr.mxu0 0.0
      %137 = vmatpush1.msra.mxu0 %v120
      %138 = vmatprep.subr.mxu0 0.0
      %139 = vmatpush1.msra.mxu0 %v121
      %140 = vmatprep.subr.mxu0 0.0
      %141 = vmatpush1.msra.mxu0 %v122
      %142 = vmatprep.subr.mxu0 0.0
      %143 = vmatpush1.msra.mxu0 0.0
      %144 = vmatprep.subr.mxu0 0.0
      %145 = vmatpush1.msra.mxu0 0.0
      %146 = vmatprep.subr.mxu0 0.0
      %147 = vmatpush1.msra.mxu0 0.0
      %148 = vmatprep.subr.mxu0 0.0
      %149 = vmatpush1.msra.mxu0 0.0
      %150 = vmatprep.subr.mxu0 0.0
      %151 = vmatpush1.msra.mxu0 0.0
      %152 = vmatprep.subr.mxu0 0.0
      %153 = vmatpush1.msra.mxu0 0.0
      %154 = vmatprep.subr.mxu0 0.0
      %155 = vmatpush1.msra.mxu0 0.0
      %156 = vmatprep.subr.mxu0 0.0
      %157 = vmatpush1.msra.mxu0 0.0
      %158 = vmatprep.subr.mxu0 0.0
      %159 = vmatpush1.msra.mxu0 0.0
      %160 = vmatprep.subr.mxu0 0.0
      %161 = vmatpush1.msra.mxu0 0.0
      %162 = vmatprep.subr.mxu0 0.0
      %163 = vmatpush1.msra.mxu0 0.0
      %164 = vmatprep.subr.mxu0 0.0
      %165 = vmatpush1.msra.mxu0 0.0
      %166 = vmatprep.subr.mxu0 0.0
      %167 = vmatpush1.msra.mxu0 0.0
      %168 = vmatprep.subr.mxu0 0.0
      %169 = vmatpush1.msra.mxu0 0.0
      %170 = vmatprep.subr.mxu0 0.0
      %171 = vmatpush1.msra.mxu0 0.0
      %172 = vmatprep.subr.mxu0 0.0
      %173 = vmatpush1.msra.mxu0 0.0
      %174 = vmatprep.subr.mxu0 0.0
      %175 = vmatpush1.msra.mxu0 0.0
      %176 = vmatprep.subr.mxu0 0.0
      %177 = vmatpush1.msra.mxu0 0.0
      %178 = vmatprep.subr.mxu0 0.0
      %179 = vmatpush1.msra.mxu0 0.0
      %180 = vmatprep.subr.mxu0 0.0
      %181 = vmatpush1.msra.mxu0 0.0
      %182 = vmatprep.subr.mxu0 0.0
      %183 = vmatpush1.msra.mxu0 0.0
      %184 = vmatprep.subr.mxu0 0.0
      %185 = vmatpush1.msra.mxu0 0.0
      %186 = vmatprep.subr.mxu0 0.0
      %187 = vmatpush1.msra.mxu0 0.0
      %188 = vmatprep.subr.mxu0 0.0
      %189 = vmatpush1.msra.mxu0 0.0
      %190 = vmatprep.subr.mxu0 0.0
      %191 = vmatpush1.msra.mxu0 0.0
      %192 = vmatprep.subr.mxu0 0.0
      %193 = vmatpush1.msra.mxu0 0.0
      %194 = vmatprep.subr.mxu0 0.0
      %195 = vmatpush1.msra.mxu0 0.0
      %196 = vmatprep.subr.mxu0 0.0
      %197 = vmatpush1.msra.mxu0 0.0
      %198 = vmatprep.mubr.f32.mxu0 0.0
      %199 = vmatmul.mubr.f32.gmra.mrb[0].mxu0 %v132
      %v200 = vpop.f32.mrb[0].mxu0
      %v201 = vadd.f32 %v128, %v200
      %v202 = vpop.f32.mrb[0].mxu0
      %203 = vdwg.mxu0
      %204 = vst [vmem:[#allocation3] sm:$0x3] %v201
    $region21: #{tpu_custom_call.1} parent=1 // pred_fallthru
      _
    // Predicated region
    $region22: #{tpu_custom_call.1} parent=1 // pred_check
      _
    $region23: #{tpu_custom_call.1} parent=1 // pred_check_branch
      %206 = sbr.rel (0) target = $region25
    $region24: #{tpu_custom_call.1} parent=1 // pred_region
      %s208 = ssub.s32 32, 32
      %209 = vsyncadd [#allocation4], %s208
      %s211 = sshll.u32 [#allocation3], 4
      %s212 = int_to_ptr.vmem [resolvable:$true] %s211
      %214 = dma.vmem_to_hbm [thread:$0]  %s212, 32, %s3, [#allocation4]
    $region25: #{tpu_custom_call.1} parent=1 // pred_fallthru
      _
    // Predicated region
    $region26: #{tpu_custom_call.1} parent=1 // pred_check
      _
    $region27: #{tpu_custom_call.1} parent=1 // pred_check_branch
      %216 = sbr.rel (0) target = $region29
    $region28: #{tpu_custom_call.1} parent=1 // pred_region
      %217 = dma.done [#allocation4], 32
    $region29: #{tpu_custom_call.1} parent=1 // pred_fallthru
      _
    %218 = vsyncpa [#allocation4], 1

</llo_original>
